<compile_context>
chip_gen: v7x
topology: tpu7x:2x2x1
jax: 0.10.0
libtpu: 0.0.40
codegen_flags: <defaults>
</compile_context>

<pallas_src>
import functools
import math

import jax
import jax.numpy as jnp
from jax.experimental import pallas as pl
from jax.experimental.pallas import tpu as pltpu

BN_EPS = 1e-5
ACT_DTYPE = jnp.bfloat16   # inter-kernel activations in HBM; f32 math inside kernels


def _device_config():
    """Per-generation VMEM limit / lane-tile target (v5e/v6e: 128 MiB VMEM, v7x: 64 MiB)."""
    vmem_cap = None
    try:
        info = pltpu.get_tpu_info()
        vmem_cap = getattr(info, "vmem_capacity_bytes", None)
    except Exception:
        vmem_cap = None
    if vmem_cap is None:
        vmem_cap = 64 * 1024 * 1024
    if vmem_cap >= 100 * 1024 * 1024:          # v5e / v6e
        return 100 * 1024 * 1024, 1024
    return 48 * 1024 * 1024, 512               # v7x: headroom under 64 MiB physical


VMEM_LIMIT, SEQ_TARGET = _device_config()


def _seq_tile(n, target=None):
    """Largest lane-aligned tile of the sequence axis (multiple of 128 dividing n, or n)."""
    target = target or SEQ_TARGET
    if n <= target:
        return n
    t = (target // 128) * 128
    while t >= 128:
        if n % t == 0:
            return t
        t -= 128
    return n


def _attn_tile(n, heads, nkv):
    """Sequence tile for the attention kernel, bounded by the (heads, Nkv, TN) scores VMEM."""
    scores_budget = VMEM_LIMIT // 4
    cap = scores_budget // max(heads * nkv * 4, 1)
    cap = max(min(cap, SEQ_TARGET), 128)
    if n <= cap:
        return n
    t = (cap // 128) * 128
    while t >= 128:
        if n % t == 0:
            return t
        t -= 128
    return n


def _mlp_strip_rows(H, W, hid):
    """Rows per strip for the fused MLP so the (hid, TH*W) hidden working set fits VMEM."""
    budget = int(VMEM_LIMIT * 0.4)
    per_lane = hid * 4 * 5                      # ~5 live f32 copies of the hidden slab
    max_lanes = max(budget // per_lane, W)
    cands = [th for th in range(1, H + 1)
             if H % th == 0 and (th * W % 128 == 0 or th == H)]
    fitting = [th for th in cands if th * W <= max_lanes]
    return max(fitting) if fitting else min(cands)


# ------------------------------------------------------------------ Pallas kernels

def _matmul_seq_kernel(x_ref, w_ref, b_ref, o_ref):
    # x_ref: (K, TN) bf16, w_ref: (Cout, K) bf16, b_ref: (Cout, 1) f32
    y = jnp.dot(w_ref[...], x_ref[...].astype(jnp.bfloat16),
                preferred_element_type=jnp.float32)
    o_ref[...] = (y + b_ref[...]).astype(o_ref.dtype)


def matmul_seq(x, w, b, out_dtype=None):
    """y[b] = w @ x[b] + bias over (B, K, N); N tiled, bf16 MXU operands, f32 accumulate."""
    B, K, N = x.shape
    Cout = w.shape[0]
    TN = _seq_tile(N)
    out_dtype = out_dtype or ACT_DTYPE
    return pl.pallas_call(
        _matmul_seq_kernel,
        out_shape=jax.ShapeDtypeStruct((B, Cout, N), out_dtype),
        grid=(B, N // TN),
        in_specs=[
            pl.BlockSpec((None, K, TN), lambda bb, nn: (bb, 0, nn)),
            pl.BlockSpec((Cout, K), lambda bb, nn: (0, 0)),
            pl.BlockSpec((Cout, 1), lambda bb, nn: (0, 0)),
        ],
        out_specs=pl.BlockSpec((None, Cout, TN), lambda bb, nn: (bb, 0, nn)),
        compiler_params=pltpu.CompilerParams(
            dimension_semantics=("parallel", "parallel"),
            vmem_limit_bytes=VMEM_LIMIT),
    )(x.astype(jnp.bfloat16), w.astype(jnp.bfloat16),
      b.reshape(Cout, 1).astype(jnp.float32))


def _attn_kernel(x_ref, kv_ref, wq_ref, bq_ref, pv_ref, bp_ref, o_ref, *,
                 num_heads, scale):
    # Rank-1 simplified attention (exact rewrite of the module's max-pool attention):
    #   out = x + pv * (scale * sum_h max_kv(q_h^T k_h)) + bp,   pv = Wp @ mean_N(norm1(x))
    xb = x_ref[...]                                              # (C, TN) bf16
    xf = xb.astype(jnp.float32)
    q = jnp.dot(wq_ref[...], xb.astype(jnp.bfloat16),
                preferred_element_type=jnp.float32) + bq_ref[...]   # (C, TN) f32
    C, TN = xf.shape
    hd = C // num_heads
    nkv = kv_ref.shape[-1]
    q3 = q.astype(jnp.bfloat16).reshape(num_heads, hd, TN)
    k3 = kv_ref[...].astype(jnp.bfloat16).reshape(num_heads, hd, nkv)
    # one batched MXU matmul over heads (no per-head python unroll, no kh.T copies)
    scores = jax.lax.dot_general(k3, q3, (((1,), (1,)), ((0,), (0,))),
                                 preferred_element_type=jnp.float32)  # (H, Nkv, TN)
    amax = jnp.max(scores, axis=1)                               # (H, TN)
    asum = jnp.sum(amax, axis=0, keepdims=True)                  # (1, TN)
    y = pv_ref[...] * (asum * scale) + bp_ref[...] + xf          # proj + residual fused
    o_ref[...] = y.astype(o_ref.dtype)


def attention_maxpool(x, kv, wq, bq, pv, bp, num_heads, scale):
    B, C, N = x.shape
    Nkv = kv.shape[2]
    TN = _attn_tile(N, num_heads, Nkv)
    kernel = functools.partial(_attn_kernel, num_heads=num_heads, scale=scale)
    return pl.pallas_call(
        kernel,
        out_shape=jax.ShapeDtypeStruct((B, C, N), ACT_DTYPE),
        grid=(B, N // TN),
        in_specs=[
            pl.BlockSpec((None, C, TN), lambda bb, nn: (bb, 0, nn)),
            pl.BlockSpec((None, C, Nkv), lambda bb, nn: (bb, 0, 0)),
            pl.BlockSpec((C, C), lambda bb, nn: (0, 0)),
            pl.BlockSpec((C, 1), lambda bb, nn: (0, 0)),
            pl.BlockSpec((None, C, 1), lambda bb, nn: (bb, 0, 0)),
            pl.BlockSpec((C, 1), lambda bb, nn: (0, 0)),
        ],
        out_specs=pl.BlockSpec((None, C, TN), lambda bb, nn: (bb, 0, nn)),
        compiler_params=pltpu.CompilerParams(
            dimension_semantics=("parallel", "parallel"),
            vmem_limit_bytes=VMEM_LIMIT),
    )(x.astype(jnp.bfloat16), kv.astype(jnp.bfloat16),
      wq.astype(jnp.bfloat16), bq.reshape(C, 1).astype(jnp.float32),
      pv.reshape(B, C, 1).astype(jnp.float32),
      bp.reshape(C, 1).astype(jnp.float32))


def _mlp_kernel(x_ref, halo_ref, w1_ref, b1_ref, dww_ref, dwb_ref, w2_ref, b2_ref,
                o_ref, *, W, TH):
    # Fused: fc1(+norm2+bn1 folded) -> dwconv3x3(+bn2 folded) -> relu -> fc2 -> +residual,
    # tiled over TH-row strips.  Halo rows (row above / below the strip) come from a tiny
    # precomputed block; their fc1 output is recomputed here and zeroed at the image
    # top/bottom (dwconv zero-pads the *hidden* map).  Hidden never leaves VMEM.
    strip = pl.program_id(1)
    n_strips = pl.num_programs(1)
    THW = TH * W

    xb = x_ref[...]                                              # (C, THW) bf16
    xf = xb.astype(jnp.float32)
    w1 = w1_ref[...]                                             # (hid, C) bf16
    b1 = b1_ref[...]                                             # (hid, 1) f32
    h = jnp.dot(w1, xb.astype(jnp.bfloat16),
                preferred_element_type=jnp.float32) + b1         # (hid, THW) f32

    halo = halo_ref[...]                                         # (2, C, W) bf16
    h_top = jnp.dot(w1, halo[0].astype(jnp.bfloat16),
                    preferred_element_type=jnp.float32) + b1     # (hid, W)
    h_bot = jnp.dot(w1, halo[1].astype(jnp.bfloat16),
                    preferred_element_type=jnp.float32) + b1
    valid_top = jnp.where(strip > 0, 1.0, 0.0).astype(jnp.float32)
    valid_bot = jnp.where(strip < n_strips - 1, 1.0, 0.0).astype(jnp.float32)
    h_top = h_top * valid_top
    h_bot = h_bot * valid_bot

    hid = h.shape[0]
    zcol = jnp.zeros((hid, 1), jnp.float32)
    # extended frame: [pad | row above | strip rows | row below | pad]
    h_ext = jnp.concatenate([zcol, h_top, h, h_bot, zcol], axis=1)  # (hid, THW+2W+2)

    col = jax.lax.broadcasted_iota(jnp.int32, (1, THW), 1) % W
    mask_l = (col > 0).astype(jnp.float32)                       # valid for dj = -1 taps
    mask_r = (col < W - 1).astype(jnp.float32)                   # valid for dj = +1 taps
    dww = dww_ref[...]                                           # (hid, 9) f32

    acc = jnp.zeros((hid, THW), jnp.float32)
    for di in (-1, 0, 1):
        for dj in (-1, 0, 1):
            start = 1 + W + di * W + dj
            sl = h_ext[:, start:start + THW]
            if dj == -1:
                sl = sl * mask_l
            elif dj == 1:
                sl = sl * mask_r
            idx = (di + 1) * 3 + (dj + 1)
            acc = acc + sl * dww[:, idx:idx + 1]
    acc = jnp.maximum(acc + dwb_ref[...], 0.0)

    y = jnp.dot(w2_ref[...], acc.astype(jnp.bfloat16),
                preferred_element_type=jnp.float32) + b2_ref[...]
    o_ref[...] = (y + xf).astype(o_ref.dtype)


def mlp_fused(x, w1, b1, dww, dwb, w2, b2, H, W):
    B, C, N = x.shape
    hid = w1.shape[0]
    TH = _mlp_strip_rows(H, W, hid)
    ns = H // TH

    x = x.astype(ACT_DTYPE)
    # per-strip halo rows (row above / below each strip); image boundaries are zeroed
    # in-kernel anyway, so the zero pad rows here are just placeholders.
    x_img = x.reshape(B, C, H, W)
    xp = jnp.pad(x_img, ((0, 0), (0, 0), (1, 1), (0, 0)))
    top = xp[:, :, 0:ns * TH:TH, :]                    # (B, C, ns, W) rows i*TH - 1
    bot = xp[:, :, TH + 1:ns * TH + 2:TH, :]           # (B, C, ns, W) rows (i+1)*TH
    halo = jnp.stack([top, bot], axis=0)               # (2, B, C, ns, W)
    halo = jnp.transpose(halo, (1, 3, 0, 2, 4))        # (B, ns, 2, C, W)

    kernel = functools.partial(_mlp_kernel, W=W, TH=TH)
    return pl.pallas_call(
        kernel,
        out_shape=jax.ShapeDtypeStruct((B, C, N), ACT_DTYPE),
        grid=(B, ns),
        in_specs=[
            pl.BlockSpec((None, C, TH * W), lambda bb, ii: (bb, 0, ii)),
            pl.BlockSpec((None, None, 2, C, W), lambda bb, ii: (bb, ii, 0, 0, 0)),
            pl.BlockSpec((hid, C), lambda bb, ii: (0, 0)),
            pl.BlockSpec((hid, 1), lambda bb, ii: (0, 0)),
            pl.BlockSpec((hid, 9), lambda bb, ii: (0, 0)),
            pl.BlockSpec((hid, 1), lambda bb, ii: (0, 0)),
            pl.BlockSpec((C, hid), lambda bb, ii: (0, 0)),
            pl.BlockSpec((C, 1), lambda bb, ii: (0, 0)),
        ],
        out_specs=pl.BlockSpec((None, C, TH * W), lambda bb, ii: (bb, 0, ii)),
        compiler_params=pltpu.CompilerParams(
            dimension_semantics=("parallel", "parallel"),
            vmem_limit_bytes=VMEM_LIMIT),
    )(x, halo,
      w1.astype(jnp.bfloat16), b1.reshape(hid, 1).astype(jnp.float32),
      dww.astype(jnp.float32), dwb.reshape(hid, 1).astype(jnp.float32),
      w2.astype(jnp.bfloat16), b2.reshape(C, 1).astype(jnp.float32))


# ------------------------------------------------------------------ JAX glue / folding

def bn_scale_shift(p):
    s = p['gamma'] * jax.lax.rsqrt(p['var'] + BN_EPS)
    t = p['beta'] - p['mean'] * s
    return s, t


def im2col(x, kh, kw, stride, pad):
    """NCHW -> (B, C*kh*kw, OH*OW) patches (bf16), matching torch weight.reshape(Cout,-1)."""
    # TODO(synk): an in-kernel strided gather would avoid the k*k/stride^2 patch expansion.
    B, C, H, W = x.shape
    if pad:
        x = jnp.pad(x, ((0, 0), (0, 0), (pad, pad), (pad, pad)))
    OH = (H + 2 * pad - kh) // stride + 1
    OW = (W + 2 * pad - kw) // stride + 1
    cols = []
    for i in range(kh):
        for j in range(kw):
            cols.append(x[:, :, i:i + (OH - 1) * stride + 1:stride,
                              j:j + (OW - 1) * stride + 1:stride])
    patches = jnp.stack(cols, axis=2)                  # (B, C, kh*kw, OH, OW)
    return patches.reshape(B, C * kh * kw, OH * OW), OH, OW


def nonoverlap_patches(x_img, sr):
    """kernel==stride conv patches: pure reshape/transpose (bf16), no expansion."""
    # TODO(synk): fold this patch extraction + kv matmul into one kernel to kill the
    # XLA transpose HBM pass.
    B, C, H, W = x_img.shape
    OH, OW = H // sr, W // sr
    p = x_img.reshape(B, C, OH, sr, OW, sr)
    p = p.transpose(0, 1, 3, 5, 2, 4)                  # (B, C, sr, sr, OH, OW)
    return p.reshape(B, C * sr * sr, OH * OW)


def patch_embed_forward(x_img, p):
    k, s, pad = p['ksize'], p['stride'], p['pad']
    patches, OH, OW = im2col(x_img.astype(ACT_DTYPE), k, k, s, pad)
    cout = p['w'].shape[0]
    sc, sh = bn_scale_shift(p['bn'])                   # fold BN into the conv weights
    w_eff = p['w'].reshape(cout, -1) * sc[:, None]
    b_eff = sc * p['b'] + sh
    return matmul_seq(patches, w_eff, b_eff), OH, OW


def attn_forward(x, H, W, blk, num_heads, sr):
    B, C, N = x.shape
    hd = C // num_heads
    scale = hd ** -0.5
    s1, t1 = bn_scale_shift(blk['norm1'])
    a = blk['attn']

    # q path: fold block.norm1 into the q weights (module q Conv1d has no bias)
    wq_eff = a['q_w'] * s1[None, :]
    bq_eff = a['q_w'] @ t1

    # kv path: fold norm1 + sr-conv + sr-BN + k into a single matmul
    if sr > 1:
        ssr, tsr = bn_scale_shift(a['sr_bn'])
        wk2 = a['k_w'] * ssr[None, :]
        w_sr = (a['sr_w'] * s1[None, :, None, None]).reshape(C, -1)
        b_sr = a['sr_b'] + jnp.einsum('ocij,c->o', a['sr_w'], t1)
        w_kv = wk2 @ w_sr                                          # (C, C*sr*sr)
        b_kv = wk2 @ b_sr + a['k_w'] @ tsr
        patches = nonoverlap_patches(x.reshape(B, C, H, W), sr)
        kv = matmul_seq(patches, w_kv, b_kv)
    else:
        kv = matmul_seq(x, a['k_w'] * s1[None, :], a['k_w'] @ t1)

    # rank-1 "v" path: every head's v row equals mean_N(norm1(x)); project once (exact).
    vmean = jnp.mean(x.astype(jnp.float32), axis=2) * s1[None, :] + t1[None, :]  # (B, C)
    pv = vmean @ a['proj_w'].T                                     # (B, C)

    return attention_maxpool(x, kv, wq_eff, bq_eff, pv, a['proj_b'], num_heads, scale)


def mlp_forward(x, H, W, blk):
    s2, t2 = bn_scale_shift(blk['norm2'])
    m = blk['mlp']
    sA, tA = bn_scale_shift(m['bn1'])
    sB, tB = bn_scale_shift(m['bn2'])
    hid = m['fc1_w'].shape[0]
    # fold block.norm2 (input side) and mlp.bn1 (output side) into fc1
    w1_eff = (m['fc1_w'] * s2[None, :]) * sA[:, None]
    b1_eff = sA * (m['fc1_w'] @ t2 + m['fc1_b']) + tA
    # fold mlp.bn2 into the depthwise weights
    dww_eff = m['dw_w'].reshape(hid, 9) * sB[:, None]
    dwb_eff = sB * m['dw_b'] + tB
    return mlp_fused(x, w1_eff, b1_eff, dww_eff, dwb_eff,
                     m['fc2_w'], m['fc2_b'], H, W)


def block_forward(x, H, W, blk, num_heads, sr):
    x = attn_forward(x, H, W, blk, num_heads, sr)   # residual fused in kernel
    x = mlp_forward(x, H, W, blk)                   # residual fused in kernel
    return x


def simplified_transformer_forward(x, params):
    # TODO(synk): for stages where N < 128 lanes, fold the batch axis into the lane axis to
    # avoid narrow masked stores (only matters at tiny demo resolutions).
    B = x.shape[0]
    outs = []
    ref_feat = {'1': [], '2': [], '3': [], '4': []}
    for stage in range(4):
        x_seq, H, W = patch_embed_forward(x, params['patch_embed'][stage])
        for blk in params['blocks'][stage]:
            x_seq = block_forward(x_seq, H, W, blk,
                                  params['num_heads'][stage], params['sr_ratios'][stage])
            ref_feat[str(stage + 1)].append(x_seq)
        x = x_seq.reshape(B, -1, H, W)
        outs.append(x)
    return outs, ref_feat


# ------------------------------------------------------------------ deterministic params

def init_params(key, in_chans=3, embed_dims=(16, 32, 64, 128), num_heads=(1, 2, 4, 8),
                mlp_ratios=(4, 4, 4, 4), depths=(1, 1, 1, 1), sr_ratios=(8, 4, 2, 1)):
    keys = iter(jax.random.split(key, 512))

    def nrm(shape, std=0.02):
        return jax.random.normal(next(keys), shape, jnp.float32) * std

    def bn(c):
        return dict(gamma=jnp.ones((c,), jnp.float32), beta=jnp.zeros((c,), jnp.float32),
                    mean=jnp.zeros((c,), jnp.float32), var=jnp.ones((c,), jnp.float32))

    pe_cfg = [(7, 4, 3, in_chans, embed_dims[0]),
              (3, 2, 1, embed_dims[0], embed_dims[1]),
              (3, 2, 1, embed_dims[1], embed_dims[2]),
              (3, 2, 1, embed_dims[2], embed_dims[3])]
    patch_embeds = []
    for (k, s, pad, cin, cout) in pe_cfg:
        patch_embeds.append(dict(
            ksize=k, stride=s, pad=pad,
            w=nrm((cout, cin, k, k), std=math.sqrt(2.0 / (k * k * cout))),
            b=jnp.zeros((cout,), jnp.float32),
            bn=bn(cout)))

    blocks = []
    for st in range(4):
        dim = embed_dims[st]
        hid = dim * mlp_ratios[st]
        sr = sr_ratios[st]
        stage_blocks = []
        for _ in range(depths[st]):
            attn = dict(q_w=nrm((dim, dim)), k_w=nrm((dim, dim)),
                        proj_w=nrm((dim, dim)), proj_b=jnp.zeros((dim,), jnp.float32))
            if sr > 1:
                attn['sr_w'] = nrm((dim, dim, sr, sr), std=math.sqrt(2.0 / (sr * sr * dim)))
                attn['sr_b'] = jnp.zeros((dim,), jnp.float32)
                attn['sr_bn'] = bn(dim)
            mlp = dict(fc1_w=nrm((hid, dim)), fc1_b=jnp.zeros((hid,), jnp.float32),
                       dw_w=nrm((hid, 1, 3, 3), std=math.sqrt(2.0 / 9)),
                       dw_b=jnp.zeros((hid,), jnp.float32),
                       fc2_w=nrm((dim, hid)), fc2_b=jnp.zeros((dim,), jnp.float32),
                       bn1=bn(hid), bn2=bn(hid))
            stage_blocks.append(dict(norm1=bn(dim), norm2=bn(dim), attn=attn, mlp=mlp))
        blocks.append(stage_blocks)

    return dict(patch_embed=patch_embeds, blocks=blocks,
                num_heads=list(num_heads), sr_ratios=list(sr_ratios))


# ------------------------------------------------------------------ main

if __name__ == "__main__":
    key = jax.random.PRNGKey(0)
    pkey, xkey = jax.random.split(key)
    params = init_params(pkey)
    # small image consistent with the backbone: (B, in_chans, H, W) NCHW
    x = jax.random.normal(xkey, (2, 3, 64, 64), jnp.float32)
    outs, ref_feat = simplified_transformer_forward(x, params)
    jax.block_until_ready(outs)
    jax.block_until_ready(ref_feat)
    print("KERNEL_OK")
</pallas_src>

<mosaic_0001>
module attributes {stable_mosaic.version = 11 : i64} {
  func.func @_matmul_seq_kernel(%arg0: i32, %arg1: i32, %arg2: memref<1x147x256xbf16, #tpu.memory_space<vmem>>, %arg3: memref<16x147xbf16, #tpu.memory_space<vmem>>, %arg4: memref<16x1xf32, #tpu.memory_space<vmem>>, %arg5: memref<1x16x256xbf16, #tpu.memory_space<vmem>>) attributes {dimension_semantics = [#tpu.dimension_semantics<parallel>, #tpu.dimension_semantics<parallel>], iteration_bounds = array<i64: 2, 1>, scalar_prefetch = 0 : i64, scratch_operands = 0 : i64, tpu.core_type = #tpu.core_type<tc>, window_params = [{transform_indices = @transform_0, window_bounds = array<i64: 1, 147, 256>}, {pipeline_mode = #tpu.pipeline_mode<synchronous>, transform_indices = @transform_1, window_bounds = array<i64: 16, 147>}, {pipeline_mode = #tpu.pipeline_mode<synchronous>, transform_indices = @transform_2, window_bounds = array<i64: 16, 1>}, {transform_indices = @transform_3, window_bounds = array<i64: 1, 16, 256>}]} {
    %c0 = arith.constant 0 : index
    %c0_0 = arith.constant 0 : index
    %0 = vector.load %arg3[%c0, %c0_0] : memref<16x147xbf16, #tpu.memory_space<vmem>>, vector<16x147xbf16>
    %c0_1 = arith.constant 0 : index
    %c0_2 = arith.constant 0 : index
    %c0_3 = arith.constant 0 : index
    %1 = vector.load %arg2[%c0_1, %c0_2, %c0_3] : memref<1x147x256xbf16, #tpu.memory_space<vmem>>, vector<1x147x256xbf16>
    %2 = vector.shape_cast %1 : vector<1x147x256xbf16> to vector<147x256xbf16>
    %cst = arith.constant dense<0.000000e+00> : vector<16x256xf32>
    %3 = tpu.matmul %0, %2, %cst {dimension_numbers = #tpu.dot_dimension_numbers<[1], [0], [0], [1], [0, 0, 1, 1], [], []>} : vector<16x147xbf16>, vector<147x256xbf16>, vector<16x256xf32> -> vector<16x256xf32>
    %c0_4 = arith.constant 0 : index
    %c0_5 = arith.constant 0 : index
    %4 = vector.load %arg4[%c0_4, %c0_5] : memref<16x1xf32, #tpu.memory_space<vmem>>, vector<16x1xf32>
    %5 = vector.broadcast %4 : vector<16x1xf32> to vector<16x256xf32>
    %6 = arith.addf %3, %5 : vector<16x256xf32>
    %7 = arith.truncf %6 : vector<16x256xf32> to vector<16x256xbf16>
    %c0_6 = arith.constant 0 : index
    %c0_7 = arith.constant 0 : index
    %c0_8 = arith.constant 0 : index
    %8 = vector.load %arg5[%c0_6, %c0_7, %c0_8] : memref<1x16x256xbf16, #tpu.memory_space<vmem>>, vector<1x16x256xbf16>
    %9 = vector.shape_cast %8 : vector<1x16x256xbf16> to vector<16x256xbf16>
    %10 = vector.shape_cast %7 : vector<16x256xbf16> to vector<1x16x256xbf16>
    tpu.vector_store %arg5[%c0_6, %c0_7, %c0_8], %10 {strides = array<i32>} : memref<1x16x256xbf16, #tpu.memory_space<vmem>>, vector<1x16x256xbf16>,
    return
  }
  func.func @transform_0(%arg0: i32, %arg1: i32) -> (i32, i32, i32) {
    %c0_i32 = arith.constant 0 : i32
    %c0_i32_0 = arith.constant 0 : i32
    return %arg0, %c0_i32, %arg1 : i32, i32, i32
  }
  func.func @transform_1(%arg0: i32, %arg1: i32) -> (i32, i32) {
    %c0_i32 = arith.constant 0 : i32
    %c0_i32_0 = arith.constant 0 : i32
    %c0_i32_1 = arith.constant 0 : i32
    return %c0_i32, %c0_i32_0 : i32, i32
  }
  func.func @transform_2(%arg0: i32, %arg1: i32) -> (i32, i32) {
    %c0_i32 = arith.constant 0 : i32
    %c0_i32_0 = arith.constant 0 : i32
    %c0_i32_1 = arith.constant 0 : i32
    return %c0_i32, %c0_i32_0 : i32, i32
  }
  func.func @transform_3(%arg0: i32, %arg1: i32) -> (i32, i32, i32) {
    %c0_i32 = arith.constant 0 : i32
    %c0_i32_0 = arith.constant 0 : i32
    return %arg0, %c0_i32, %arg1 : i32, i32, i32
  }
}

</mosaic_0001>

<llo_original>
// kernel: tpu_custom_call.1
$region0: #{tpu_custom_call.1}
  #allocation0 [shape = 'u32[]', space=smem, size = 0x4, offset = 0x4, fixed_abs, tag = 'smem constant byte address 0x4 - core index']
  #allocation1 [shape = 'u32[144,128]{1,0:T(1,128)}', space=vmem, size = 0x12000, scoped, tag = 'internal scratch']
  %s0 = inlined_call_operand.vmem [shape: bf16[2,147,256], index: 0, kind: input, shape index: {}]
  %s1 = inlined_call_operand.vmem [shape: bf16[16,147], index: 1, kind: input, shape index: {}]
  %s2 = inlined_call_operand.vmem [shape: f32[16,1], index: 2, kind: input, shape index: {}]
  %s3 = inlined_call_operand.hbm [shape: bf16[2,16,256], index: 3, kind: output, shape index: {}]
  %s4 = sld [smem:[#allocation0]]
  $region45: #{tpu_custom_call.1} parent=0
    _
  %s6 = ssub.s32 1, %s4
  %s7 = scalar_select 0, %s6, %s4
  $region1: #{tpu_custom_call.1} parent=0
    #allocation2 [shape = 'u8[16384]{0}', space=vmem, size = 0x4000, scoped, tag = 'output window, operand 0']
    #allocation3 [shape = 's32[2]{0}', space=sflag, size = 0x8, scoped, tag = 'scoped memory for tpu_custom_call.1']
    %8 = vsyncpa [#allocation3], 0
    %s9 = scalar_lea.sflag [#allocation3], 1
    %10 = vsyncpa %s9, 0
    loop: start=0, step=1, limit=4
    $region2: #{tpu_custom_call.1} parent=1 // loop_pre_header
      _
    $region3: #{tpu_custom_call.1} parent=1 // loop_header
      %s12 = sphi 0, %s16
      %p13 = scmp.ge.s32.totalorder %s12, 4
      %s19 = sphi 0, %s31
      %s20 = sphi 0, %s27
      %s21 = sphi 0, %s19
      %s22 = sphi 0, %s20
      %s23 = sphi 0, %s21
      %s24 = sphi 0, %s22
      %s36 = sphi 0, %s38
      %s39 = sphi 0, %s36
      %s40 = sphi 0, %s39
      %s56 = sphi 0, %s40
      %s60 = sphi 0, %s60
      %s62 = sphi 0, %s60
      %s63 = sphi 0, %s62
      %s77 = sphi 0, %s63
      %s81 = sphi 0, %s81
      %s83 = sphi 0, %s81
      %s84 = sphi 0, %s83
      %s98 = sphi 0, %s84
      %s106 = sphi 0, %s108
      %s109 = sphi 0, %s106
      %s110 = sphi 0, %s109
      %s126 = sphi 0, %s110
    $region4: #{tpu_custom_call.1} parent=1 // loop_header_branch
      %15 = sbr.rel (%p13) target = $region8
    $region5: #{tpu_custom_call.1} parent=1 // loop_body
      %s17 = ssub.s32 %s12, 1
      %s18 = ssub.s32 %s12, 2
      %s25 = sadd.s32 1, %s20
      %p26 = scmp.ge.s32.totalorder %s25, 1
      %s27 = scalar_select %p26, 0, %s25
      %s28 = sadd.s32 1, %s19
      %s29 = scalar_select %p26, %s28, %s19
      %p30 = scmp.ge.s32.totalorder %s29, 2
      %s31 = scalar_select %p30, 0, %s29
      %s32 = ssub.s32 %s19, %s31
      %s33 = ssub.s32 %s20, %s27
      %s34 = sor.u32 %s32, %s33
      %p35 = scmp.eq.s32.totalorder %s34, 0
      %s37 = sadd.s32 %s36, 1
      %s38 = scalar_select %p35, %s36, %s37
      %p41 = pneg %p35
      %p42 = scmp.eq.s32.totalorder %s12, 1
      %p43 = por %p41, %p42
      %p44 = scmp.ne.s32.totalorder %s36, %s39
      %p45 = scmp.eq.s32.totalorder %s12, 0
      %p46 = por %p44, %p45
      %p47 = scmp.ne.s32.totalorder %s36, %s39
      %p48 = scmp.eq.s32.totalorder %s17, 1
      %p49 = por %p47, %p48
      %p50 = scmp.ne.s32.totalorder %s39, %s40
      %p51 = scmp.eq.s32.totalorder %s17, 0
      %p52 = por %p50, %p51
      %p53 = scmp.ne.s32.totalorder %s39, %s40
      %p54 = scmp.eq.s32.totalorder %s18, 1
      %p55 = por %p53, %p54
      %p57 = scmp.ne.s32.totalorder %s40, %s56
      %p58 = scmp.eq.s32.totalorder %s18, 0
      %p59 = por %p57, %p58
      %s61 = sadd.s32 %s60, 1
      %p64 = scmp.eq.s32.totalorder %s12, 1
      %p65 = scmp.ne.s32.totalorder %s60, %s62
      %p66 = scmp.eq.s32.totalorder %s12, 0
      %p67 = por %p65, %p66
      %p68 = scmp.ne.s32.totalorder %s60, %s62
      %p69 = scmp.eq.s32.totalorder %s17, 1
      %p70 = por %p68, %p69
      %p71 = scmp.ne.s32.totalorder %s62, %s63
      %p72 = scmp.eq.s32.totalorder %s17, 0
      %p73 = por %p71, %p72
      %p74 = scmp.ne.s32.totalorder %s62, %s63
      %p75 = scmp.eq.s32.totalorder %s18, 1
      %p76 = por %p74, %p75
      %p78 = scmp.ne.s32.totalorder %s63, %s77
      %p79 = scmp.eq.s32.totalorder %s18, 0
      %p80 = por %p78, %p79
      %s82 = sadd.s32 %s81, 1
      %p85 = scmp.eq.s32.totalorder %s12, 1
      %p86 = scmp.ne.s32.totalorder %s81, %s83
      %p87 = scmp.eq.s32.totalorder %s12, 0
      %p88 = por %p86, %p87
      %p89 = scmp.ne.s32.totalorder %s81, %s83
      %p90 = scmp.eq.s32.totalorder %s17, 1
      %p91 = por %p89, %p90
      %p92 = scmp.ne.s32.totalorder %s83, %s84
      %p93 = scmp.eq.s32.totalorder %s17, 0
      %p94 = por %p92, %p93
      %p95 = scmp.ne.s32.totalorder %s83, %s84
      %p96 = scmp.eq.s32.totalorder %s18, 1
      %p97 = por %p95, %p96
      %p99 = scmp.ne.s32.totalorder %s84, %s98
      %p100 = scmp.eq.s32.totalorder %s18, 0
      %p101 = por %p99, %p100
      %s102 = ssub.s32 %s19, %s31
      %s103 = ssub.s32 %s20, %s27
      %s104 = sor.u32 %s102, %s103
      %p105 = scmp.eq.s32.totalorder %s104, 0
      %s107 = sadd.s32 %s106, 1
      %s108 = scalar_select %p105, %s106, %s107
      %p111 = pneg %p105
      %p112 = scmp.eq.s32.totalorder %s12, 1
      %p113 = por %p111, %p112
      %p114 = scmp.ne.s32.totalorder %s106, %s109
      %p115 = scmp.eq.s32.totalorder %s12, 0
      %p116 = por %p114, %p115
      %p117 = scmp.ne.s32.totalorder %s106, %s109
      %p118 = scmp.eq.s32.totalorder %s17, 1
      %p119 = por %p117, %p118
      %p120 = scmp.ne.s32.totalorder %s109, %s110
      %p121 = scmp.eq.s32.totalorder %s17, 0
      %p122 = por %p120, %p121
      %p123 = scmp.ne.s32.totalorder %s109, %s110
      %p124 = scmp.eq.s32.totalorder %s18, 1
      %p125 = por %p123, %p124
      %p127 = scmp.ne.s32.totalorder %s110, %s126
      %p128 = scmp.eq.s32.totalorder %s18, 0
      %p129 = por %p127, %p128
      %p130 = scmp.le.s32.totalorder 1, %s12
      %p131 = scmp.lt.s32.totalorder %s12, 3
      %p132 = pnand %p130, %p131
      %p133 = pneg %p132
      // Predicated region
      $region9: #{tpu_custom_call.1} parent=5 // pred_check
        _
      $region10: #{tpu_custom_call.1} parent=5 // pred_check_branch
        %135 = sbr.rel (%p132) target = $region12
      $region11: #{tpu_custom_call.1} parent=5 // pred_region
        %s136 = ssub.s32 %s12, 1
        // Predicated region
        $region13: #{tpu_custom_call.1} parent=11 // pred_check
          %p137 = pneg %p73
        $region14: #{tpu_custom_call.1} parent=11 // pred_check_branch
          %139 = sbr.rel (%p137) target = $region16
        $region15: #{tpu_custom_call.1} parent=11 // pred_region
          _
        $region16: #{tpu_custom_call.1} parent=11 // pred_fallthru
          _
        // Predicated region
        $region17: #{tpu_custom_call.1} parent=11 // pred_check
          %p140 = pneg %p94
        $region18: #{tpu_custom_call.1} parent=11 // pred_check_branch
          %142 = sbr.rel (%p140) target = $region20
        $region19: #{tpu_custom_call.1} parent=11 // pred_region
          _
        $region20: #{tpu_custom_call.1} parent=11 // pred_fallthru
          _
      $region12: #{tpu_custom_call.1} parent=5 // pred_fallthru
        _
      %p143 = scmp.lt.s32.totalorder %s12, 2
      // Predicated region
      $region21: #{tpu_custom_call.1} parent=5 // pred_check
        %p144 = pneg %p143
      $region22: #{tpu_custom_call.1} parent=5 // pred_check_branch
        %146 = sbr.rel (%p144) target = $region24
      $region23: #{tpu_custom_call.1} parent=5 // pred_region
        // Predicated region
        $region25: #{tpu_custom_call.1} parent=23 // pred_check
          %p147 = pneg %p46
        $region26: #{tpu_custom_call.1} parent=23 // pred_check_branch
          %149 = sbr.rel (%p147) target = $region28
        $region27: #{tpu_custom_call.1} parent=23 // pred_region
          %s150 = smul.u32 2, %s20
          %p151 = scmp.lt.s32.totalorder %s19, 1
          %s152 = scalar_select %p151, %s19, 1
          %p153 = scmp.lt.s32.totalorder %s150, 1
          %s154 = scalar_select %p153, %s150, 1
          %s155 = smul.addr %s152, 38
          %s156 = sadd.s32 %s154, %s155
          %s157 = smul.addr %s156, 4
          %s158 = scalar_lea.vmem %s0, %s157
          %s159 = smul.u32 2, %s20
        $region28: #{tpu_custom_call.1} parent=23 // pred_fallthru
          _
      $region24: #{tpu_custom_call.1} parent=5 // pred_fallthru
        _
      %p160 = scmp.le.s32.totalorder 1, %s12
      %p161 = scmp.lt.s32.totalorder %s12, 3
      %p162 = pnand %p160, %p161
      %p163 = pneg %p162
      // Predicated region
      $region29: #{tpu_custom_call.1} parent=5 // pred_check
        _
      $region30: #{tpu_custom_call.1} parent=5 // pred_check_branch
        %165 = sbr.rel (%p162) target = $region32
      $region31: #{tpu_custom_call.1} parent=5 // pred_region
        %s166 = ssub.s32 %s12, 1
        %s167 = smul.u32 2, %s22
        %p168 = scmp.lt.s32.totalorder %s21, 1
        %s169 = scalar_select %p168, %s21, 1
        %p170 = scmp.lt.s32.totalorder %s167, 1
        %s171 = scalar_select %p170, %s167, 1
        %s172 = smul.addr %s169, 38
        %s173 = sadd.s32 %s171, %s172
        %s174 = smul.addr %s173, 4
        %s175 = scalar_lea.vmem %s0, %s174
        %p176 = pneg %p52
        %p177 = pneg %p49
        %p178 = pneg %p73
        %p179 = pneg %p70
        %p180 = pneg %p94
        %p181 = pneg %p91
        %p182 = pneg %p122
        %p183 = pneg %p119
        %s184 = sand.u32 %s109, 1
        %s185 = scalar_lea.sflag [#allocation3], %s184
        %s186 = sand.u32 %s109, 1
        %s187 = smul.addr %s186, 16
        %s188 = scalar_lea.vmem [#allocation2], %s187
        %s189 = smul.u32 2, %s22
        %p190 = scmp.lt.s32.totalorder %s21, 1
        %s191 = scalar_select %p190, %s21, 1
        %p192 = scmp.lt.s32.totalorder %s189, 1
        %s193 = scalar_select %p192, %s189, 1
        %s194 = smul.addr %s191, 38
        %s195 = sadd.s32 %s193, %s194
        %s196 = smul.addr %s195, 4
        %s197 = scalar_lea.vmem %s0, %s196
        %s198 = smul.u32 2, %s22
        %s199 = smul.u32 2, %s22
        %v201 = vld [vmem:[%s1] sm:$0xff]
        %v202 = vld [vmem:[%s1 + $0x8] sm:$0xff]
        %v203 = vld [vmem:[%s197] sm:$0xff]
        %v204 = vld [vmem:[%s197 + $0x8] sm:$0xff]
        %v205 = vld [vmem:[%s197 + $0x10] sm:$0xff]
        %v206 = vld [vmem:[%s197 + $0x18] sm:$0xff]
        %v207 = vld [vmem:[%s197 + $0x20] sm:$0xff]
        %v208 = vld [vmem:[%s197 + $0x28] sm:$0xff]
        %v209 = vld [vmem:[%s197 + $0x30] sm:$0xff]
        %v210 = vld [vmem:[%s197 + $0x38] sm:$0xff]
        %v211 = vld [vmem:[%s197 + $0x40] sm:$0xff]
        %v212 = vld [vmem:[%s197 + $0x48] sm:$0xff]
        %v213 = vld [vmem:[%s197 + $0x50] sm:$0xff]
        %v214 = vld [vmem:[%s197 + $0x58] sm:$0xff]
        %v215 = vld [vmem:[%s197 + $0x60] sm:$0xff]
        %v216 = vld [vmem:[%s197 + $0x68] sm:$0xff]
        %v217 = vld [vmem:[%s197 + $0x70] sm:$0xff]
        %v218 = vld [vmem:[%s197 + $0x78] sm:$0xff]
        %v219 = vld [vmem:[%s197 + $0x80] sm:$0xff]
        %v220 = vld [vmem:[%s197 + $0x88] sm:$0xff]
        %v221 = vld [vmem:[%s197 + $0x90] sm:$0x33]
        %v222 = vld [vmem:[%s2] sm:$0xff]
        %v223 = vld [vmem:[%s2 + $0x8] sm:$0xff]
        %225 = vset.pattern.permute.xlu0 0
        %226 = vperm.xlu0 %225, %v222
        %v227 = vpop.permute.xlu0 %226
        %230 = vset.pattern.permute.xlu0 0
        %231 = vperm.xlu0 %230, %v223
        %v232 = vpop.permute.xlu0 %231
        %v236 = vunpack.c.l.b16 %v201
        %v237 = vunpack.c.h.b16 %v201
        %v238 = vunpack.c.l.b16 %v202
        %v239 = vunpack.c.h.b16 %v202
        %v240 = vpack.c.b16 %v238, %v236
        %v241 = vpack.c.b16 %v239, %v237
        %v262 = vunpack.c.l.b16 %v203
        %v263 = vunpack.c.h.b16 %v203
        %v264 = vunpack.c.l.b16 %v204
        %v265 = vunpack.c.h.b16 %v204
        %v266 = vunpack.c.l.b16 %v205
        %v267 = vunpack.c.h.b16 %v205
        %v268 = vunpack.c.l.b16 %v206
        %v269 = vunpack.c.h.b16 %v206
        %v270 = vunpack.c.l.b16 %v207
        %v271 = vunpack.c.h.b16 %v207
        %v272 = vunpack.c.l.b16 %v208
        %v273 = vunpack.c.h.b16 %v208
        %v274 = vunpack.c.l.b16 %v209
        %v275 = vunpack.c.h.b16 %v209
        %v276 = vunpack.c.l.b16 %v210
        %v277 = vunpack.c.h.b16 %v210
        %v278 = vunpack.c.l.b16 %v211
        %v279 = vunpack.c.h.b16 %v211
        %v280 = vunpack.c.l.b16 %v212
        %v281 = vunpack.c.h.b16 %v212
        %v282 = vunpack.c.l.b16 %v213
        %v283 = vunpack.c.h.b16 %v213
        %v284 = vunpack.c.l.b16 %v214
        %v285 = vunpack.c.h.b16 %v214
        %v286 = vunpack.c.l.b16 %v215
        %v287 = vunpack.c.h.b16 %v215
        %v288 = vunpack.c.l.b16 %v216
        %v289 = vunpack.c.h.b16 %v216
        %v290 = vunpack.c.l.b16 %v217
        %v291 = vunpack.c.h.b16 %v217
        %v292 = vunpack.c.l.b16 %v218
        %v293 = vunpack.c.h.b16 %v218
        %v294 = vunpack.c.l.b16 %v219
        %v295 = vunpack.c.h.b16 %v219
        %v296 = vunpack.c.l.b16 %v220
        %v297 = vunpack.c.h.b16 %v220
        %v298 = vunpack.c.l.b16 %v221
        %v299 = vunpack.c.h.b16 %v221
        %v300 = vpack.c.b16 %v264, %v262
        %v301 = vpack.c.b16 %v265, %v263
        %v302 = vpack.c.b16 %v268, %v266
        %v303 = vpack.c.b16 %v269, %v267
        %v304 = vpack.c.b16 %v272, %v270
        %v305 = vpack.c.b16 %v273, %v271
        %v306 = vpack.c.b16 %v276, %v274
        %v307 = vpack.c.b16 %v277, %v275
        %v308 = vpack.c.b16 %v280, %v278
        %v309 = vpack.c.b16 %v281, %v279
        %v310 = vpack.c.b16 %v284, %v282
        %v311 = vpack.c.b16 %v285, %v283
        %v312 = vpack.c.b16 %v288, %v286
        %v313 = vpack.c.b16 %v289, %v287
        %v314 = vpack.c.b16 %v292, %v290
        %v315 = vpack.c.b16 %v293, %v291
        %v316 = vpack.c.b16 %v296, %v294
        %v317 = vpack.c.b16 %v297, %v295
        %v318 = vpack.c.b16 %v298, %v298
        %v319 = vpack.c.b16 %v299, %v299
        %vm338 = vcmask 154624
        %v340 = vsel %vm338, %v241, 0
        %vm342 = vcmask 1040384
        %vm343 = vcmask 1041408
        %v344 = vsel %vm342, 4294967295, 65535
        %v345 = vsel %vm343, %v344, 0
        %v347 = vand.u32 %v318, %v345
        %v350 = vand.u32 %v319, %v345
        %352 = vmatprep.subr.bf16.mxu0 %v301
        %353 = vmatpush1.bf16.msra.mxu0 %v300
        %354 = vmatprep.subr.bf16.mxu0 %v303
        %355 = vmatpush1.bf16.msra.mxu0 %v302
        %356 = vmatprep.subr.bf16.mxu0 %v305
        %357 = vmatpush1.bf16.msra.mxu0 %v304
        %358 = vmatprep.subr.bf16.mxu0 %v307
        %359 = vmatpush1.bf16.msra.mxu0 %v306
        %360 = vmatprep.subr.bf16.mxu0 %v309
        %361 = vmatpush1.bf16.msra.mxu0 %v308
        %362 = vmatprep.subr.bf16.mxu0 %v311
        %363 = vmatpush1.bf16.msra.mxu0 %v310
        %364 = vmatprep.subr.bf16.mxu0 %v313
        %365 = vmatpush1.bf16.msra.mxu0 %v312
        %366 = vmatprep.subr.bf16.mxu0 %v315
        %367 = vmatpush1.bf16.msra.mxu0 %v314
        %368 = vmatprep.subr.bf16.mxu0 %v317
        %369 = vmatpush1.bf16.msra.mxu0 %v316
        %370 = vmatprep.subr.bf16.mxu0 %v350
        %371 = vmatpush1.bf16.msra.mxu0 %v347
        %372 = vmatprep.subr.bf16.mxu0 0
        %373 = vmatpush1.bf16.msra.mxu0 0
        %374 = vmatprep.subr.bf16.mxu0 0
        %375 = vmatpush1.bf16.msra.mxu0 0
        %376 = vmatprep.subr.bf16.mxu0 0
        %377 = vmatpush1.bf16.msra.mxu0 0
        %378 = vmatprep.subr.bf16.mxu0 0
        %379 = vmatpush1.bf16.msra.mxu0 0
        %380 = vmatprep.subr.bf16.mxu0 0
        %381 = vmatpush1.bf16.msra.mxu0 0
        %382 = vmatprep.subr.bf16.mxu0 0
        %383 = vmatpush1.bf16.msra.mxu0 0
        %384 = vmatprep.mubr.bf16.mxu0 %v340
        %385 = vmatmul.mubr.bf16.gmra.mrb[0].mxu0 %v240
        %v386 = vpop.f32.mrb[0].mxu0
        %v387 = vadd.f32 %v227, %v386
        %v388 = vpop.f32.mrb[0].mxu0
        %v389 = vadd.f32 %v227, %v388
        %v390 = vpop.f32.mrb[0].mxu0
        %v391 = vadd.f32 %v232, %v390
        %v392 = vpop.f32.mrb[0].mxu0
        %v393 = vadd.f32 %v232, %v392
        %394 = vdwg.mxu0
        %v395 = vpack.c.bf16 %v391, %v387
        %v396 = vpack.c.bf16 %v393, %v389
        %v399 = vunpack.c.l.b16 %v395
        %v400 = vunpack.c.l.b16 %v396
        %v401 = vunpack.c.h.b16 %v395
        %v402 = vunpack.c.h.b16 %v396
        %v403 = vpack.c.b16 %v400, %v399
        %v404 = vpack.c.b16 %v402, %v401
        %407 = vst [vmem:[%s188] sm:$0xff] %v403
        %408 = vst [vmem:[%s188 + $0x8] sm:$0xff] %v404
        %s409 = sand.u32 %s109, 1
        %s410 = scalar_lea.sflag [#allocation3], %s409
        %s411 = sand.u32 %s109, 1
        %s412 = smul.addr %s411, 16
        %s413 = scalar_lea.vmem [#allocation2], %s412
        // Predicated region
        $region33: #{tpu_custom_call.1} parent=31 // pred_check
          %p414 = pneg %p119
        $region34: #{tpu_custom_call.1} parent=31 // pred_check_branch
          %416 = sbr.rel (%p414) target = $region36
        $region35: #{tpu_custom_call.1} parent=31 // pred_region
          %s417 = smul.u32 2, %s22
          %s419 = ssub.s32 256, 256
          %420 = vsyncadd %s410, %s419
          %s421 = smul.addr %s21, 4
          %s422 = sadd.s32 %s417, %s421
          %s423 = smul.addr %s422, 64
          %s424 = scalar_lea.hbm %s3, %s423
          %s425 = sshll.u32 %s413, 4
          %s426 = int_to_ptr.vmem [resolvable:$true] %s425
          %431 = dma.vmem_to_hbm [thread:$0]  %s426, 256, %s424, %s410, 128, 128, 8
        $region36: #{tpu_custom_call.1} parent=31 // pred_fallthru
          _
      $region32: #{tpu_custom_call.1} parent=5 // pred_fallthru
        _
      %p432 = scmp.le.s32.totalorder 2, %s12
      // Predicated region
      $region37: #{tpu_custom_call.1} parent=5 // pred_check
        %p433 = pneg %p432
      $region38: #{tpu_custom_call.1} parent=5 // pred_check_branch
        %435 = sbr.rel (%p433) target = $region40
      $region39: #{tpu_custom_call.1} parent=5 // pred_region
        %s436 = ssub.s32 %s12, 2
        // Predicated region
        $region41: #{tpu_custom_call.1} parent=39 // pred_check
          %p437 = pneg %p125
        $region42: #{tpu_custom_call.1} parent=39 // pred_check_branch
          %439 = sbr.rel (%p437) target = $region44
        $region43: #{tpu_custom_call.1} parent=39 // pred_region
          %s440 = sand.u32 %s110, 1
          %s441 = scalar_lea.sflag [#allocation3], %s440
          %s442 = sand.u32 %s110, 1
          %s443 = smul.addr %s442, 16
          %s444 = scalar_lea.vmem [#allocation2], %s443
          %445 = dma.done %s441, 256
        $region44: #{tpu_custom_call.1} parent=39 // pred_fallthru
          _
      $region40: #{tpu_custom_call.1} parent=5 // pred_fallthru
        _
    $region6: #{tpu_custom_call.1} parent=1 // loop_footer
      %s16 = sadd.s32 1, %s12
    $region7: #{tpu_custom_call.1} parent=1 // loop_footer_branch
      %11 = sbr.rel target = $region3
    $region8: #{tpu_custom_call.1} parent=1 // loop_exit
      _
    %446 = vsyncpa [#allocation3], 1
    %s447 = scalar_lea.sflag [#allocation3], 1
    %448 = vsyncpa %s447, 1

</llo_original>
